<compile_context>
chip_gen: v7x
topology: tpu7x:2x2x1
jax: 0.10.0
libtpu: 0.0.40
codegen_flags: <defaults>
</compile_context>

<pallas_src>
import math

import jax
import jax.numpy as jnp
from jax.experimental import pallas as pl
from jax.experimental.pallas import tpu as pltpu


def _cdiv(a, b):
    return -(-a // b)


def _round_up(a, b):
    return _cdiv(a, b) * b


# ---------------------------------------------------------------------------
# Kernel: one fused row-tile of   relu(relu(x@W0+b0)@W1+b1)@W2+b2
# ---------------------------------------------------------------------------
def _mlp_kernel(x_ref, w0_ref, b0_ref, w1_ref, b1_ref, w2_ref, b2_ref, o_ref):
    # Cast operands to the (possibly bf16) weight dtype *inside* the kernel so
    # the wrapper never pays an extra HBM pass for the cast.  Accumulation and
    # the bias/ReLU epilogue stay f32 (v5e has no bf16 VPU path).
    x = x_ref[...].astype(w0_ref.dtype)
    h = jnp.dot(x, w0_ref[...], preferred_element_type=jnp.float32) + b0_ref[...]
    h = jnp.maximum(h, 0.0)
    # NOTE: with a bf16 matmul dtype the inter-layer activations are truncated
    # to bf16 before the next MXU pass (accumulation itself stays f32).
    h = jnp.dot(h.astype(w1_ref.dtype), w1_ref[...],
                preferred_element_type=jnp.float32) + b1_ref[...]
    h = jnp.maximum(h, 0.0)
    h = jnp.dot(h.astype(w2_ref.dtype), w2_ref[...],
                preferred_element_type=jnp.float32) + b2_ref[...]
    o_ref[...] = h.astype(o_ref.dtype)


# ---------------------------------------------------------------------------
# One-time parameter packing (hoisted out of the per-call path)
# ---------------------------------------------------------------------------
def pack_params(params, *, matmul_dtype=None, max_pack=8, max_kron_width=512):
    """Transform the parameter set into the lane-dense layout the kernel eats.

    Call once per parameter set and reuse for every forward (the kron / tile /
    cast ops are HBM-touching XLA ops we do NOT want on the per-call path).
    matmul_dtype=jnp.bfloat16 is recommended on v6e/v7x (x is cast in-kernel).
    """
    w0, b0 = params["w0"], params["b0"]
    w1, b1 = params["w1"], params["b1"]
    w2, b2 = params["w2"], params["b2"]
    enc_d = w0.shape[0]
    dec_d = w2.shape[1]

    if enc_d % 128 == 0 and dec_d % 128 == 0:
        # Already lane-dense.
        mode, p = "none", 1
        d_in, d_out = enc_d, dec_d
        w0k, b0k, w1k, b1k, w2k, b2k = w0, b0, w1, b1, w2, b2
    else:
        a = 128 // math.gcd(128, enc_d)
        b = 128 // math.gcd(128, dec_d)
        p = a * b // math.gcd(a, b)  # lcm: smallest p with p*enc_d, p*dec_d % 128 == 0
        if p <= max_pack and p * max(enc_d, dec_d) <= max_kron_width:
            # Tiny dims: [M, d] -> [M/p, p*d] free row-major reshape + kron(I_p, W).
            mode = "kron"
            d_in, d_out = p * enc_d, p * dec_d
            eye = jnp.eye(p, dtype=w0.dtype)
            w0k, w1k, w2k = (jnp.kron(eye, w) for w in (w0, w1, w2))
            b0k, b1k, b2k = (jnp.tile(bb, p) for bb in (b0, b1, b2))
        else:
            # Moderate/large dims: zero-pad features to 128-lane multiples
            # (kron's p^2 weight blow-up is only worth it for very small d).
            mode, p = "pad", 1
            d_in, d_out = _round_up(enc_d, 128), _round_up(dec_d, 128)
            w0k = jnp.zeros((d_in, d_in), w0.dtype).at[:enc_d, :enc_d].set(w0)
            w1k = jnp.zeros((d_in, d_out), w1.dtype).at[:enc_d, :dec_d].set(w1)
            w2k = jnp.zeros((d_out, d_out), w2.dtype).at[:dec_d, :dec_d].set(w2)
            b0k = jnp.zeros((d_in,), b0.dtype).at[:enc_d].set(b0)
            b1k = jnp.zeros((d_out,), b1.dtype).at[:dec_d].set(b1)
            b2k = jnp.zeros((d_out,), b2.dtype).at[:dec_d].set(b2)

    if matmul_dtype is not None:
        w0k, w1k, w2k = (w.astype(matmul_dtype) for w in (w0k, w1k, w2k))

    return {
        "mode": mode, "p": p, "enc_d": enc_d, "dec_d": dec_d,
        "d_in": d_in, "d_out": d_out,
        "w0": w0k, "b0": b0k.reshape(1, -1).astype(jnp.float32),
        "w1": w1k, "b1": b1k.reshape(1, -1).astype(jnp.float32),
        "w2": w2k, "b2": b2k.reshape(1, -1).astype(jnp.float32),
    }


def _choose_block_rows(rows, per_row_bytes, fixed_bytes, *,
                       vmem_budget_bytes, max_block_rows, min_grid=2):
    """VMEM-budgeted row tile; >= min_grid balanced steps when rows allow."""
    if rows <= 8:
        return rows, 1
    budget = max(vmem_budget_bytes - fixed_bytes, 8 * per_row_bytes)
    cap = min(max_block_rows, budget // per_row_bytes)
    cap = max(8, (cap // 8) * 8)
    cap = min(cap, max(8, (rows // 8) * 8))
    steps = max(min_grid, _cdiv(rows, cap))       # >= 2 keeps both v7x TCs busy
    block_rows = min(cap, _round_up(_cdiv(rows, steps), 8))
    return block_rows, _cdiv(rows, block_rows)


# ---------------------------------------------------------------------------
# Forward
# ---------------------------------------------------------------------------
def linear_transformer_forward(x, params, *, max_block_rows=512,
                               vmem_budget_bytes=32 * 1024 * 1024,
                               out_dtype=None):
    """x: [..., enc_d].  params: raw {"w0","b0",...} dict or pack_params() output
    (preferred: pack once, reuse every call)."""
    packed = params if "mode" in params else pack_params(params)
    mode, p = packed["mode"], packed["p"]
    enc_d, dec_d = packed["enc_d"], packed["dec_d"]
    d_in, d_out = packed["d_in"], packed["d_out"]
    w0, b0 = packed["w0"], packed["b0"]
    w1, b1 = packed["w1"], packed["b1"]
    w2, b2 = packed["w2"], packed["b2"]
    if out_dtype is None:
        out_dtype = x.dtype   # pass bf16 here to halve the dominant output stream

    orig_shape = x.shape
    x2 = x.reshape(-1, enc_d)
    m = x2.shape[0]

    if mode == "kron":
        # Pad at most p-1 rows so the free [M, d] -> [M/p, p*d] reshape exists;
        # far cheaper than dropping back to the masked-store (p=1) path.
        if m % p:
            x2 = jnp.pad(x2, ((0, p - m % p), (0, 0)))
        x2 = x2.reshape(x2.shape[0] // p, d_in)
    elif mode == "pad" and d_in != enc_d:
        x2 = jnp.pad(x2, ((0, 0), (0, d_in - enc_d)))
    rows = x2.shape[0]

    # --- VMEM-budgeted row tiling (no explicit pad; Pallas handles the ragged
    # last block with padded reads / dropped out-of-range writes) -------------
    x_item = jnp.dtype(x2.dtype).itemsize
    o_item = jnp.dtype(out_dtype).itemsize
    fixed = 2 * sum(int(a.size) * jnp.dtype(a.dtype).itemsize
                    for a in (w0, b0, w1, b1, w2, b2))     # conservative: 2-buffered
    per_row = 2 * d_in * x_item + 2 * d_out * o_item + 4 * 2 * (d_in + d_out)
    block_rows, grid_m = _choose_block_rows(
        rows, per_row, fixed, vmem_budget_bytes=vmem_budget_bytes,
        max_block_rows=max_block_rows)
    vmem_limit = int(min(100 << 20,
                         max(32 << 20, fixed + block_rows * per_row + (4 << 20))))

    # --- cost hint from the packed shapes actually executed ------------------
    exec_rows = grid_m * block_rows
    cost = pl.CostEstimate(
        flops=2 * exec_rows * (d_in * d_in + d_in * d_out + d_out * d_out),
        transcendentals=0,
        bytes_accessed=int(exec_rows * d_in * x_item
                           + exec_rows * d_out * o_item + fixed // 2),
    )

    def make_call(single_buffer_weights):
        if single_buffer_weights:
            def res_spec(a):   # grid-invariant operand: DMA'd once, 1 buffer
                return pl.BlockSpec(a.shape, lambda i: (0, 0),
                                    pipeline_mode=pl.Buffered(1))
        else:
            def res_spec(a):
                return pl.BlockSpec(a.shape, lambda i: (0, 0))
        return pl.pallas_call(
            _mlp_kernel,
            out_shape=jax.ShapeDtypeStruct((rows, d_out), out_dtype),
            grid_spec=pltpu.PrefetchScalarGridSpec(
                num_scalar_prefetch=0,
                grid=(grid_m,),
                in_specs=[
                    pl.BlockSpec((block_rows, d_in), lambda i: (i, 0)),   # x tile
                    res_spec(w0), res_spec(b0),
                    res_spec(w1), res_spec(b1),
                    res_spec(w2), res_spec(b2),
                ],
                out_specs=pl.BlockSpec((block_rows, d_out), lambda i: (i, 0)),
            ),
            compiler_params=pltpu.CompilerParams(
                dimension_semantics=("parallel",),   # rows shard across v7x TCs
                vmem_limit_bytes=vmem_limit,
            ),
            cost_estimate=cost,
        )

    args = (x2, w0, b0, w1, b1, w2, b2)
    try:
        out = make_call(True)(*args)
    except Exception:
        # TODO(synk): drop this fallback once pl.Buffered(1) on pallas_call
        # inputs is guaranteed by the minimum supported jax version.
        out = make_call(False)(*args)

    if mode == "kron":
        out = out.reshape(-1, dec_d)[:m]     # free un-pack + drop <p pad rows
    elif mode == "pad":
        out = out[:, :dec_d]                 # drop padded feature lanes
    return out.reshape(*orig_shape[:-1], dec_d)


# ---------------------------------------------------------------------------
# Init + reference (mimics torch.nn.Linear's uniform(-1/sqrt(in), 1/sqrt(in)))
# ---------------------------------------------------------------------------
def init_params(key, encoder_d_model, decoder_d_model, dtype=jnp.float32):
    ks = jax.random.split(key, 6)

    def linear(kw, kb, d_in, d_out):
        bound = 1.0 / (d_in ** 0.5)
        w = jax.random.uniform(kw, (d_in, d_out), dtype, -bound, bound)  # [in, out]
        b = jax.random.uniform(kb, (d_out,), dtype, -bound, bound)
        return w, b

    w0, b0 = linear(ks[0], ks[1], encoder_d_model, encoder_d_model)
    w1, b1 = linear(ks[2], ks[3], encoder_d_model, decoder_d_model)
    w2, b2 = linear(ks[4], ks[5], decoder_d_model, decoder_d_model)
    return {"w0": w0, "b0": b0, "w1": w1, "b1": b1, "w2": w2, "b2": b2}


def _reference(x, p):
    h = jnp.maximum(x @ p["w0"] + p["b0"], 0.0)
    h = jnp.maximum(h @ p["w1"] + p["b1"], 0.0)
    return h @ p["w2"] + p["b2"]


if __name__ == "__main__":
    encoder_d_model = 32
    decoder_d_model = 64

    key = jax.random.PRNGKey(0)
    kx, kp, kx2 = jax.random.split(key, 3)
    params = init_params(kp, encoder_d_model, decoder_d_model)
    packed = pack_params(params)            # hoisted: pack once, reuse per call

    # Case 1: spec-sized input (batch=2, seq=8) -> single lane-dense block.
    x = jax.random.normal(kx, (2, 8, encoder_d_model), jnp.float32)
    out = jax.block_until_ready(linear_transformer_forward(x, packed))
    ref = _reference(x, params)
    assert out.shape == (2, 8, decoder_d_model), out.shape
    assert jnp.allclose(out, ref, atol=1e-4, rtol=1e-4), "mismatch vs reference (case 1)"

    # Case 2: ragged row count (45 rows) -> exercises the <p row pad, the
    # 2-step parallel grid, and Pallas' implicit partial-last-block handling.
    x2 = jax.random.normal(kx2, (5, 9, encoder_d_model), jnp.float32)
    out2 = jax.block_until_ready(linear_transformer_forward(x2, packed))
    ref2 = _reference(x2, params)
    assert out2.shape == (5, 9, decoder_d_model), out2.shape
    assert jnp.allclose(out2, ref2, atol=1e-4, rtol=1e-4), "mismatch vs reference (case 2)"

    print("KERNEL_OK")
</pallas_src>

<mosaic_0001>
module attributes {stable_mosaic.version = 11 : i64} {
  func.func @_mlp_kernel(%arg0: i32, %arg1: memref<4x128xf32, #tpu.memory_space<vmem>>, %arg2: memref<128x128xf32, #tpu.memory_space<vmem>>, %arg3: memref<1x128xf32, #tpu.memory_space<vmem>>, %arg4: memref<128x256xf32, #tpu.memory_space<vmem>>, %arg5: memref<1x256xf32, #tpu.memory_space<vmem>>, %arg6: memref<256x256xf32, #tpu.memory_space<vmem>>, %arg7: memref<1x256xf32, #tpu.memory_space<vmem>>, %arg8: memref<4x256xf32, #tpu.memory_space<vmem>>) attributes {dimension_semantics = [#tpu.dimension_semantics<parallel>], iteration_bounds = array<i64: 1>, scalar_prefetch = 0 : i64, scratch_operands = 0 : i64, tpu.core_type = #tpu.core_type<tc>, window_params = [{transform_indices = @transform_0, window_bounds = array<i64: 4, 128>}, {pipeline_mode = #tpu.pipeline_mode<synchronous>, transform_indices = @transform_1, window_bounds = array<i64: 128, 128>}, {pipeline_mode = #tpu.pipeline_mode<synchronous>, transform_indices = @transform_2, window_bounds = array<i64: 1, 128>}, {pipeline_mode = #tpu.pipeline_mode<synchronous>, transform_indices = @transform_3, window_bounds = array<i64: 128, 256>}, {pipeline_mode = #tpu.pipeline_mode<synchronous>, transform_indices = @transform_4, window_bounds = array<i64: 1, 256>}, {pipeline_mode = #tpu.pipeline_mode<synchronous>, transform_indices = @transform_5, window_bounds = array<i64: 256, 256>}, {pipeline_mode = #tpu.pipeline_mode<synchronous>, transform_indices = @transform_6, window_bounds = array<i64: 1, 256>}, {transform_indices = @transform_7, window_bounds = array<i64: 4, 256>}]} {
    %c0 = arith.constant 0 : index
    %c0_0 = arith.constant 0 : index
    %0 = vector.load %arg1[%c0, %c0_0] : memref<4x128xf32, #tpu.memory_space<vmem>>, vector<4x128xf32>
    %c0_1 = arith.constant 0 : index
    %c0_2 = arith.constant 0 : index
    %1 = vector.load %arg2[%c0_1, %c0_2] : memref<128x128xf32, #tpu.memory_space<vmem>>, vector<128x128xf32>
    %cst = arith.constant dense<0.000000e+00> : vector<4x128xf32>
    %2 = tpu.matmul %0, %1, %cst {dimension_numbers = #tpu.dot_dimension_numbers<[1], [0], [0], [1], [0, 0, 1, 1], [], []>} : vector<4x128xf32>, vector<128x128xf32>, vector<4x128xf32> -> vector<4x128xf32>
    %c0_3 = arith.constant 0 : index
    %c0_4 = arith.constant 0 : index
    %3 = vector.load %arg3[%c0_3, %c0_4] : memref<1x128xf32, #tpu.memory_space<vmem>>, vector<1x128xf32>
    %4 = vector.broadcast %3 : vector<1x128xf32> to vector<4x128xf32>
    %5 = arith.addf %2, %4 : vector<4x128xf32>
    %cst_5 = arith.constant 0.000000e+00 : f32
    %6 = vector.broadcast %cst_5 : f32 to vector<4x128xf32>
    %7 = arith.maximumf %5, %6 : vector<4x128xf32>
    %c0_6 = arith.constant 0 : index
    %c0_7 = arith.constant 0 : index
    %8 = vector.load %arg4[%c0_6, %c0_7] : memref<128x256xf32, #tpu.memory_space<vmem>>, vector<128x256xf32>
    %cst_8 = arith.constant dense<0.000000e+00> : vector<4x256xf32>
    %9 = tpu.matmul %7, %8, %cst_8 {dimension_numbers = #tpu.dot_dimension_numbers<[1], [0], [0], [1], [0, 0, 1, 1], [], []>} : vector<4x128xf32>, vector<128x256xf32>, vector<4x256xf32> -> vector<4x256xf32>
    %c0_9 = arith.constant 0 : index
    %c0_10 = arith.constant 0 : index
    %10 = vector.load %arg5[%c0_9, %c0_10] : memref<1x256xf32, #tpu.memory_space<vmem>>, vector<1x256xf32>
    %11 = vector.broadcast %10 : vector<1x256xf32> to vector<4x256xf32>
    %12 = arith.addf %9, %11 : vector<4x256xf32>
    %cst_11 = arith.constant 0.000000e+00 : f32
    %13 = vector.broadcast %cst_11 : f32 to vector<4x256xf32>
    %14 = arith.maximumf %12, %13 : vector<4x256xf32>
    %c0_12 = arith.constant 0 : index
    %c0_13 = arith.constant 0 : index
    %15 = vector.load %arg6[%c0_12, %c0_13] : memref<256x256xf32, #tpu.memory_space<vmem>>, vector<256x256xf32>
    %cst_14 = arith.constant dense<0.000000e+00> : vector<4x256xf32>
    %16 = tpu.matmul %14, %15, %cst_14 {dimension_numbers = #tpu.dot_dimension_numbers<[1], [0], [0], [1], [0, 0, 1, 1], [], []>} : vector<4x256xf32>, vector<256x256xf32>, vector<4x256xf32> -> vector<4x256xf32>
    %c0_15 = arith.constant 0 : index
    %c0_16 = arith.constant 0 : index
    %17 = vector.load %arg7[%c0_15, %c0_16] : memref<1x256xf32, #tpu.memory_space<vmem>>, vector<1x256xf32>
    %18 = vector.broadcast %17 : vector<1x256xf32> to vector<4x256xf32>
    %19 = arith.addf %16, %18 : vector<4x256xf32>
    %c0_17 = arith.constant 0 : index
    %c0_18 = arith.constant 0 : index
    %20 = vector.load %arg8[%c0_17, %c0_18] : memref<4x256xf32, #tpu.memory_space<vmem>>, vector<4x256xf32>
    tpu.vector_store %arg8[%c0_17, %c0_18], %19 {strides = array<i32>} : memref<4x256xf32, #tpu.memory_space<vmem>>, vector<4x256xf32>,
    return
  }
  func.func @transform_0(%arg0: i32) -> (i32, i32) {
    %c0_i32 = arith.constant 0 : i32
    %c0_i32_0 = arith.constant 0 : i32
    return %arg0, %c0_i32 : i32, i32
  }
  func.func @transform_1(%arg0: i32) -> (i32, i32) {
    %c0_i32 = arith.constant 0 : i32
    %c0_i32_0 = arith.constant 0 : i32
    %c0_i32_1 = arith.constant 0 : i32
    return %c0_i32, %c0_i32_0 : i32, i32
  }
  func.func @transform_2(%arg0: i32) -> (i32, i32) {
    %c0_i32 = arith.constant 0 : i32
    %c0_i32_0 = arith.constant 0 : i32
    %c0_i32_1 = arith.constant 0 : i32
    return %c0_i32, %c0_i32_0 : i32, i32
  }
  func.func @transform_3(%arg0: i32) -> (i32, i32) {
    %c0_i32 = arith.constant 0 : i32
    %c0_i32_0 = arith.constant 0 : i32
    %c0_i32_1 = arith.constant 0 : i32
    return %c0_i32, %c0_i32_0 : i32, i32
  }
  func.func @transform_4(%arg0: i32) -> (i32, i32) {
    %c0_i32 = arith.constant 0 : i32
    %c0_i32_0 = arith.constant 0 : i32
    %c0_i32_1 = arith.constant 0 : i32
    return %c0_i32, %c0_i32_0 : i32, i32
  }
  func.func @transform_5(%arg0: i32) -> (i32, i32) {
    %c0_i32 = arith.constant 0 : i32
    %c0_i32_0 = arith.constant 0 : i32
    %c0_i32_1 = arith.constant 0 : i32
    return %c0_i32, %c0_i32_0 : i32, i32
  }
  func.func @transform_6(%arg0: i32) -> (i32, i32) {
    %c0_i32 = arith.constant 0 : i32
    %c0_i32_0 = arith.constant 0 : i32
    %c0_i32_1 = arith.constant 0 : i32
    return %c0_i32, %c0_i32_0 : i32, i32
  }
  func.func @transform_7(%arg0: i32) -> (i32, i32) {
    %c0_i32 = arith.constant 0 : i32
    %c0_i32_0 = arith.constant 0 : i32
    return %arg0, %c0_i32 : i32, i32
  }
}

module attributes {stable_mosaic.version = 11 : i64} {
  func.func @_mlp_kernel(%arg0: i32, %arg1: memref<4x128xf32, #tpu.memory_space<vmem>>, %arg2: memref<128x128xf32, #tpu.memory_space<vmem>>, %arg3: memref<1x128xf32, #tpu.memory_space<vmem>>, %arg4: memref<128x256xf32, #tpu.memory_space<vmem>>, %arg5: memref<1x256xf32, #tpu.memory_space<vmem>>, %arg6: memref<256x256xf32, #tpu.memory_space<vmem>>, %arg7: memref<1x256xf32, #tpu.memory_space<vmem>>, %arg8: memref<4x256xf32, #tpu.memory_space<vmem>>) attributes {dimension_semantics = [#tpu.dimension_semantics<parallel>], iteration_bounds = array<i64: 1>, scalar_prefetch = 0 : i64, scratch_operands = 0 : i64, tpu.core_type = #tpu.core_type<tc>, window_params = [{transform_indices = @transform_0, window_bounds = array<i64: 4, 128>}, {pipeline_mode = #tpu.pipeline_mode<synchronous>, transform_indices = @transform_1, window_bounds = array<i64: 128, 128>}, {pipeline_mode = #tpu.pipeline_mode<synchronous>, transform_indices = @transform_2, window_bounds = array<i64: 1, 128>}, {pipeline_mode = #tpu.pipeline_mode<synchronous>, transform_indices = @transform_3, window_bounds = array<i64: 128, 256>}, {pipeline_mode = #tpu.pipeline_mode<synchronous>, transform_indices = @transform_4, window_bounds = array<i64: 1, 256>}, {pipeline_mode = #tpu.pipeline_mode<synchronous>, transform_indices = @transform_5, window_bounds = array<i64: 256, 256>}, {pipeline_mode = #tpu.pipeline_mode<synchronous>, transform_indices = @transform_6, window_bounds = array<i64: 1, 256>}, {transform_indices = @transform_7, window_bounds = array<i64: 4, 256>}]} {
    %c0 = arith.constant 0 : index
    %c0_0 = arith.constant 0 : index
    %0 = vector.load %arg1[%c0, %c0_0] : memref<4x128xf32, #tpu.memory_space<vmem>>, vector<4x128xf32>
    %c0_1 = arith.constant 0 : index
    %c0_2 = arith.constant 0 : index
    %1 = vector.load %arg2[%c0_1, %c0_2] : memref<128x128xf32, #tpu.memory_space<vmem>>, vector<128x128xf32>
    %cst = arith.constant dense<0.000000e+00> : vector<4x128xf32>
    %2 = tpu.matmul %0, %1, %cst {dimension_numbers = #tpu.dot_dimension_numbers<[1], [0], [0], [1], [0, 0, 1, 1], [], []>} : vector<4x128xf32>, vector<128x128xf32>, vector<4x128xf32> -> vector<4x128xf32>
    %c0_3 = arith.constant 0 : index
    %c0_4 = arith.constant 0 : index
    %3 = vector.load %arg3[%c0_3, %c0_4] : memref<1x128xf32, #tpu.memory_space<vmem>>, vector<1x128xf32>
    %4 = vector.broadcast %3 : vector<1x128xf32> to vector<4x128xf32>
    %5 = arith.addf %2, %4 : vector<4x128xf32>
    %cst_5 = arith.constant 0.000000e+00 : f32
    %6 = vector.broadcast %cst_5 : f32 to vector<4x128xf32>
    %7 = arith.maximumf %5, %6 : vector<4x128xf32>
    %c0_6 = arith.constant 0 : index
    %c0_7 = arith.constant 0 : index
    %8 = vector.load %arg4[%c0_6, %c0_7] : memref<128x256xf32, #tpu.memory_space<vmem>>, vector<128x256xf32>
    %cst_8 = arith.constant dense<0.000000e+00> : vector<4x256xf32>
    %9 = tpu.matmul %7, %8, %cst_8 {dimension_numbers = #tpu.dot_dimension_numbers<[1], [0], [0], [1], [0, 0, 1, 1], [], []>} : vector<4x128xf32>, vector<128x256xf32>, vector<4x256xf32> -> vector<4x256xf32>
    %c0_9 = arith.constant 0 : index
    %c0_10 = arith.constant 0 : index
    %10 = vector.load %arg5[%c0_9, %c0_10] : memref<1x256xf32, #tpu.memory_space<vmem>>, vector<1x256xf32>
    %11 = vector.broadcast %10 : vector<1x256xf32> to vector<4x256xf32>
    %12 = arith.addf %9, %11 : vector<4x256xf32>
    %cst_11 = arith.constant 0.000000e+00 : f32
    %13 = vector.broadcast %cst_11 : f32 to vector<4x256xf32>
    %14 = arith.maximumf %12, %13 : vector<4x256xf32>
    %c0_12 = arith.constant 0 : index
    %c0_13 = arith.constant 0 : index
    %15 = vector.load %arg6[%c0_12, %c0_13] : memref<256x256xf32, #tpu.memory_space<vmem>>, vector<256x256xf32>
    %cst_14 = arith.constant dense<0.000000e+00> : vector<4x256xf32>
    %16 = tpu.matmul %14, %15, %cst_14 {dimension_numbers = #tpu.dot_dimension_numbers<[1], [0], [0], [1], [0, 0, 1, 1], [], []>} : vector<4x256xf32>, vector<256x256xf32>, vector<4x256xf32> -> vector<4x256xf32>
    %c0_15 = arith.constant 0 : index
    %c0_16 = arith.constant 0 : index
    %17 = vector.load %arg7[%c0_15, %c0_16] : memref<1x256xf32, #tpu.memory_space<vmem>>, vector<1x256xf32>
    %18 = vector.broadcast %17 : vector<1x256xf32> to vector<4x256xf32>
    %19 = arith.addf %16, %18 : vector<4x256xf32>
    %c0_17 = arith.constant 0 : index
    %c0_18 = arith.constant 0 : index
    %20 = vector.load %arg8[%c0_17, %c0_18] : memref<4x256xf32, #tpu.memory_space<vmem>>, vector<4x256xf32>
    tpu.vector_store %arg8[%c0_17, %c0_18], %19 {strides = array<i32>} : memref<4x256xf32, #tpu.memory_space<vmem>>, vector<4x256xf32>,
    return
  }
  func.func @transform_0(%arg0: i32) -> (i32, i32) {
    %c0_i32 = arith.constant 0 : i32
    %c0_i32_0 = arith.constant 0 : i32
    return %arg0, %c0_i32 : i32, i32
  }
  func.func @transform_1(%arg0: i32) -> (i32, i32) {
    %c0_i32 = arith.constant 0 : i32
    %c0_i32_0 = arith.constant 0 : i32
    %c0_i32_1 = arith.constant 0 : i32
    return %c0_i32, %c0_i32_0 : i32, i32
  }
  func.func @transform_2(%arg0: i32) -> (i32, i32) {
    %c0_i32 = arith.constant 0 : i32
    %c0_i32_0 = arith.constant 0 : i32
    %c0_i32_1 = arith.constant 0 : i32
    return %c0_i32, %c0_i32_0 : i32, i32
  }
  func.func @transform_3(%arg0: i32) -> (i32, i32) {
    %c0_i32 = arith.constant 0 : i32
    %c0_i32_0 = arith.constant 0 : i32
    %c0_i32_1 = arith.constant 0 : i32
    return %c0_i32, %c0_i32_0 : i32, i32
  }
  func.func @transform_4(%arg0: i32) -> (i32, i32) {
    %c0_i32 = arith.constant 0 : i32
    %c0_i32_0 = arith.constant 0 : i32
    %c0_i32_1 = arith.constant 0 : i32
    return %c0_i32, %c0_i32_0 : i32, i32
  }
  func.func @transform_5(%arg0: i32) -> (i32, i32) {
    %c0_i32 = arith.constant 0 : i32
    %c0_i32_0 = arith.constant 0 : i32
    %c0_i32_1 = arith.constant 0 : i32
    return %c0_i32, %c0_i32_0 : i32, i32
  }
  func.func @transform_6(%arg0: i32) -> (i32, i32) {
    %c0_i32 = arith.constant 0 : i32
    %c0_i32_0 = arith.constant 0 : i32
    %c0_i32_1 = arith.constant 0 : i32
    return %c0_i32, %c0_i32_0 : i32, i32
  }
  func.func @transform_7(%arg0: i32) -> (i32, i32) {
    %c0_i32 = arith.constant 0 : i32
    %c0_i32_0 = arith.constant 0 : i32
    return %arg0, %c0_i32 : i32, i32
  }
}

</mosaic_0001>

<llo_original>
// kernel: tpu_custom_call.1
$region0: #{tpu_custom_call.1}
  #allocation0 [shape = 'u32[]', space=smem, size = 0x4, offset = 0x4, fixed_abs, tag = 'smem constant byte address 0x4 - core index']
  #allocation1 [shape = 'u32[144,128]{1,0:T(1,128)}', space=vmem, size = 0x12000, scoped, tag = 'internal scratch']
  %s0 = inlined_call_operand.hbm [shape: f32[4,128], index: 0, kind: input, shape index: {}]
  %s1 = inlined_call_operand.hbm [shape: f32[128,128], index: 1, kind: input, shape index: {}]
  %s2 = inlined_call_operand.vmem [shape: f32[1,128], index: 2, kind: input, shape index: {}]
  %s3 = inlined_call_operand.hbm [shape: f32[128,256], index: 3, kind: input, shape index: {}]
  %s4 = inlined_call_operand.vmem [shape: f32[1,256], index: 4, kind: input, shape index: {}]
  %s5 = inlined_call_operand.hbm [shape: f32[256,256], index: 5, kind: input, shape index: {}]
  %s6 = inlined_call_operand.vmem [shape: f32[1,256], index: 6, kind: input, shape index: {}]
  %s7 = inlined_call_operand.hbm [shape: f32[4,256], index: 7, kind: output, shape index: {}]
  %s8 = sld [smem:[#allocation0]]
  $region54: #{tpu_custom_call.1} parent=0
    _
  %s10 = ssub.s32 1, %s8
  %s11 = scalar_select 0, %s10, %s8
  $region1: #{tpu_custom_call.1} parent=0
    #allocation2 [shape = 'u8[2048]{0}', space=vmem, size = 0x800, scoped, tag = 'input window, operand 0, single buffered']
    #allocation3 [shape = 's32[1]{0}', space=sflag, size = 0x4, scoped, tag = 'scoped memory for tpu_custom_call.1']
    #allocation4 [shape = 's32[1]{0}', space=sflag, size = 0x4, scoped, tag = 'scoped memory for tpu_custom_call.1']
    #allocation5 [shape = 'u8[65536]{0}', space=vmem, size = 0x10000, scoped, tag = 'input window, operand 1, single buffered']
    #allocation6 [shape = 's32[1]{0}', space=sflag, size = 0x4, scoped, tag = 'scoped memory for tpu_custom_call.1']
    #allocation7 [shape = 'u8[131072]{0}', space=vmem, size = 0x20000, scoped, tag = 'input window, operand 3, single buffered']
    #allocation8 [shape = 'u8[262144]{0}', space=vmem, size = 0x40000, scoped, tag = 'input window, operand 5, single buffered']
    #allocation9 [shape = 's32[1]{0}', space=sflag, size = 0x4, scoped, tag = 'scoped memory for tpu_custom_call.1']
    #allocation10 [shape = 'u8[4096]{0}', space=vmem, size = 0x1000, scoped, tag = 'output window, operand 0, single buffered']
    %12 = vsyncpa [#allocation3], 0
    %13 = vsyncpa [#allocation6], 0
    %14 = vsyncpa [#allocation9], 0
    %15 = vsyncpa [#allocation4], 0
    // Predicated region
    $region2: #{tpu_custom_call.1} parent=1 // pred_check
      _
    $region3: #{tpu_custom_call.1} parent=1 // pred_check_branch
      %17 = sbr.rel (0) target = $region5
    $region4: #{tpu_custom_call.1} parent=1 // pred_region
      %s19 = ssub.s32 64, 64
      %20 = vsyncadd [#allocation3], %s19
      %s22 = sshll.u32 [#allocation2], 4
      %s23 = int_to_ptr.vmem [resolvable:$true] %s22
      %25 = dma.hbm_to_vmem [thread:$0]  %s0, 64, %s23, [#allocation3]
    $region5: #{tpu_custom_call.1} parent=1 // pred_fallthru
      _
    // Predicated region
    $region6: #{tpu_custom_call.1} parent=1 // pred_check
      _
    $region7: #{tpu_custom_call.1} parent=1 // pred_check_branch
      %27 = sbr.rel (0) target = $region9
    $region8: #{tpu_custom_call.1} parent=1 // pred_region
      %s29 = ssub.s32 2048, 2048
      %30 = vsyncadd [#allocation6], %s29
      %s31 = sshll.u32 [#allocation5], 4
      %s32 = int_to_ptr.vmem [resolvable:$true] %s31
      %37 = dma.hbm_to_vmem [thread:$0]  %s1, 2048, %s32, [#allocation6], 128, 128, 8
    $region9: #{tpu_custom_call.1} parent=1 // pred_fallthru
      _
    // Predicated region
    $region10: #{tpu_custom_call.1} parent=1 // pred_check
      _
    $region11: #{tpu_custom_call.1} parent=1 // pred_check_branch
      %39 = sbr.rel (0) target = $region13
    $region12: #{tpu_custom_call.1} parent=1 // pred_region
      _
    $region13: #{tpu_custom_call.1} parent=1 // pred_fallthru
      _
    // Predicated region
    $region14: #{tpu_custom_call.1} parent=1 // pred_check
      _
    $region15: #{tpu_custom_call.1} parent=1 // pred_check_branch
      %41 = sbr.rel (0) target = $region17
    $region16: #{tpu_custom_call.1} parent=1 // pred_region
      %s43 = ssub.s32 4096, 4096
      %44 = vsyncadd [#allocation6], %s43
      %s45 = sshll.u32 [#allocation7], 4
      %s46 = int_to_ptr.vmem [resolvable:$true] %s45
      %51 = dma.hbm_to_vmem [thread:$0]  %s3, 4096, %s46, [#allocation6], 256, 256, 16
    $region17: #{tpu_custom_call.1} parent=1 // pred_fallthru
      _
    // Predicated region
    $region18: #{tpu_custom_call.1} parent=1 // pred_check
      _
    $region19: #{tpu_custom_call.1} parent=1 // pred_check_branch
      %53 = sbr.rel (0) target = $region21
    $region20: #{tpu_custom_call.1} parent=1 // pred_region
      _
    $region21: #{tpu_custom_call.1} parent=1 // pred_fallthru
      _
    // Predicated region
    $region22: #{tpu_custom_call.1} parent=1 // pred_check
      _
    $region23: #{tpu_custom_call.1} parent=1 // pred_check_branch
      %55 = sbr.rel (0) target = $region25
    $region24: #{tpu_custom_call.1} parent=1 // pred_region
      %s57 = ssub.s32 8192, 8192
      %58 = vsyncadd [#allocation9], %s57
      %s59 = sshll.u32 [#allocation8], 4
      %s60 = int_to_ptr.vmem [resolvable:$true] %s59
      %65 = dma.hbm_to_vmem [thread:$0]  %s5, 8192, %s60, [#allocation9], 256, 256, 16
    $region25: #{tpu_custom_call.1} parent=1 // pred_fallthru
      _
    // Predicated region
    $region26: #{tpu_custom_call.1} parent=1 // pred_check
      _
    $region27: #{tpu_custom_call.1} parent=1 // pred_check_branch
      %67 = sbr.rel (0) target = $region29
    $region28: #{tpu_custom_call.1} parent=1 // pred_region
      _
    $region29: #{tpu_custom_call.1} parent=1 // pred_fallthru
      _
    // Predicated region
    $region30: #{tpu_custom_call.1} parent=1 // pred_check
      _
    $region31: #{tpu_custom_call.1} parent=1 // pred_check_branch
      %69 = sbr.rel (0) target = $region33
    $region32: #{tpu_custom_call.1} parent=1 // pred_region
      %70 = dma.done [#allocation3], 64
    $region33: #{tpu_custom_call.1} parent=1 // pred_fallthru
      _
    // Predicated region
    $region34: #{tpu_custom_call.1} parent=1 // pred_check
      _
    $region35: #{tpu_custom_call.1} parent=1 // pred_check_branch
      %72 = sbr.rel (0) target = $region37
    $region36: #{tpu_custom_call.1} parent=1 // pred_region
      %73 = dma.done [#allocation6], 2048
    $region37: #{tpu_custom_call.1} parent=1 // pred_fallthru
      _
    // Predicated region
    $region38: #{tpu_custom_call.1} parent=1 // pred_check
      _
    $region39: #{tpu_custom_call.1} parent=1 // pred_check_branch
      %75 = sbr.rel (0) target = $region41
    $region40: #{tpu_custom_call.1} parent=1 // pred_region
      %76 = dma.done [#allocation6], 4096
    $region41: #{tpu_custom_call.1} parent=1 // pred_fallthru
      _
    // Predicated region
    $region42: #{tpu_custom_call.1} parent=1 // pred_check
      _
    $region43: #{tpu_custom_call.1} parent=1 // pred_check_branch
      %78 = sbr.rel (0) target = $region45
    $region44: #{tpu_custom_call.1} parent=1 // pred_region
      %79 = dma.done [#allocation9], 8192
    $region45: #{tpu_custom_call.1} parent=1 // pred_fallthru
      _
    %v80 = vld [vmem:[#allocation2] sm:$0xf]
    %v81 = vld [vmem:[#allocation5] sm:$0xff]
    %v82 = vld [vmem:[#allocation5 + $0x8] sm:$0xff]
    %v83 = vld [vmem:[#allocation5 + $0x10] sm:$0xff]
    %v84 = vld [vmem:[#allocation5 + $0x18] sm:$0xff]
    %v85 = vld [vmem:[#allocation5 + $0x20] sm:$0xff]
    %v86 = vld [vmem:[#allocation5 + $0x28] sm:$0xff]
    %v87 = vld [vmem:[#allocation5 + $0x30] sm:$0xff]
    %v88 = vld [vmem:[#allocation5 + $0x38] sm:$0xff]
    %v89 = vld [vmem:[#allocation5 + $0x40] sm:$0xff]
    %v90 = vld [vmem:[#allocation5 + $0x48] sm:$0xff]
    %v91 = vld [vmem:[#allocation5 + $0x50] sm:$0xff]
    %v92 = vld [vmem:[#allocation5 + $0x58] sm:$0xff]
    %v93 = vld [vmem:[#allocation5 + $0x60] sm:$0xff]
    %v94 = vld [vmem:[#allocation5 + $0x68] sm:$0xff]
    %v95 = vld [vmem:[#allocation5 + $0x70] sm:$0xff]
    %v96 = vld [vmem:[#allocation5 + $0x78] sm:$0xff]
    %v97 = vld [vmem:[%s2] sm:$0x1]
    %v99 = vlaneseq
    %v100 = vshrl.u32 %v99, 7
    %v101 = vsub.s32 0, %v100
    %v102 = vrot.slane %v97, %v101
    %104 = vmatprep.subr.mxu0 0.0
    %105 = vmatpush1.msra.mxu0 %v81
    %106 = vmatprep.subr.mxu0 0.0
    %107 = vmatpush1.msra.mxu0 %v82
    %108 = vmatprep.subr.mxu0 0.0
    %109 = vmatpush1.msra.mxu0 %v83
    %110 = vmatprep.subr.mxu0 0.0
    %111 = vmatpush1.msra.mxu0 %v84
    %112 = vmatprep.subr.mxu0 0.0
    %113 = vmatpush1.msra.mxu0 %v85
    %114 = vmatprep.subr.mxu0 0.0
    %115 = vmatpush1.msra.mxu0 %v86
    %116 = vmatprep.subr.mxu0 0.0
    %117 = vmatpush1.msra.mxu0 %v87
    %118 = vmatprep.subr.mxu0 0.0
    %119 = vmatpush1.msra.mxu0 %v88
    %120 = vmatprep.subr.mxu0 0.0
    %121 = vmatpush1.msra.mxu0 %v89
    %122 = vmatprep.subr.mxu0 0.0
    %123 = vmatpush1.msra.mxu0 %v90
    %124 = vmatprep.subr.mxu0 0.0
    %125 = vmatpush1.msra.mxu0 %v91
    %126 = vmatprep.subr.mxu0 0.0
    %127 = vmatpush1.msra.mxu0 %v92
    %128 = vmatprep.subr.mxu0 0.0
    %129 = vmatpush1.msra.mxu0 %v93
    %130 = vmatprep.subr.mxu0 0.0
    %131 = vmatpush1.msra.mxu0 %v94
    %132 = vmatprep.subr.mxu0 0.0
    %133 = vmatpush1.msra.mxu0 %v95
    %134 = vmatprep.subr.mxu0 0.0
    %135 = vmatpush1.msra.mxu0 %v96
    %136 = vmatprep.subr.mxu0 0.0
    %137 = vmatpush1.msra.mxu0 0.0
    %138 = vmatprep.subr.mxu0 0.0
    %139 = vmatpush1.msra.mxu0 0.0
    %140 = vmatprep.subr.mxu0 0.0
    %141 = vmatpush1.msra.mxu0 0.0
    %142 = vmatprep.subr.mxu0 0.0
    %143 = vmatpush1.msra.mxu0 0.0
    %144 = vmatprep.subr.mxu0 0.0
    %145 = vmatpush1.msra.mxu0 0.0
    %146 = vmatprep.subr.mxu0 0.0
    %147 = vmatpush1.msra.mxu0 0.0
    %148 = vmatprep.subr.mxu0 0.0
    %149 = vmatpush1.msra.mxu0 0.0
    %150 = vmatprep.subr.mxu0 0.0
    %151 = vmatpush1.msra.mxu0 0.0
    %152 = vmatprep.subr.mxu0 0.0
    %153 = vmatpush1.msra.mxu0 0.0
    %154 = vmatprep.subr.mxu0 0.0
    %155 = vmatpush1.msra.mxu0 0.0
    %156 = vmatprep.subr.mxu0 0.0
    %157 = vmatpush1.msra.mxu0 0.0
    %158 = vmatprep.subr.mxu0 0.0
    %159 = vmatpush1.msra.mxu0 0.0
    %160 = vmatprep.subr.mxu0 0.0
    %161 = vmatpush1.msra.mxu0 0.0
    %162 = vmatprep.subr.mxu0 0.0
    %163 = vmatpush1.msra.mxu0 0.0
    %164 = vmatprep.subr.mxu0 0.0
    %165 = vmatpush1.msra.mxu0 0.0
    %166 = vmatprep.subr.mxu0 0.0
    %167 = vmatpush1.msra.mxu0 0.0
    %168 = vmatprep.mubr.f32.mxu0 0.0
    %169 = vmatmul.mubr.f32.gmra.mrb[0].mxu0 %v80
    %v170 = vpop.f32.mrb[0].mxu0
    %v171 = vadd.f32 %v102, %v170
    %v172 = vpop.f32.mrb[0].mxu0
    %173 = vdwg.mxu0
    %v174 = vmax.f32 %v171, 0.0
    %v175 = vld [vmem:[#allocation7] sm:$0xff]
    %v176 = vld [vmem:[#allocation7 + $0x8] sm:$0xff]
    %v177 = vld [vmem:[#allocation7 + $0x10] sm:$0xff]
    %v178 = vld [vmem:[#allocation7 + $0x18] sm:$0xff]
    %v179 = vld [vmem:[#allocation7 + $0x20] sm:$0xff]
    %v180 = vld [vmem:[#allocation7 + $0x28] sm:$0xff]
    %v181 = vld [vmem:[#allocation7 + $0x30] sm:$0xff]
    %v182 = vld [vmem:[#allocation7 + $0x38] sm:$0xff]
    %v183 = vld [vmem:[#allocation7 + $0x40] sm:$0xff]
    %v184 = vld [vmem:[#allocation7 + $0x48] sm:$0xff]
    %v185 = vld [vmem:[#allocation7 + $0x50] sm:$0xff]
    %v186 = vld [vmem:[#allocation7 + $0x58] sm:$0xff]
    %v187 = vld [vmem:[#allocation7 + $0x60] sm:$0xff]
    %v188 = vld [vmem:[#allocation7 + $0x68] sm:$0xff]
    %v189 = vld [vmem:[#allocation7 + $0x70] sm:$0xff]
    %v190 = vld [vmem:[#allocation7 + $0x78] sm:$0xff]
    %v191 = vld [vmem:[#allocation7 + $0x80] sm:$0xff]
    %v192 = vld [vmem:[#allocation7 + $0x88] sm:$0xff]
    %v193 = vld [vmem:[#allocation7 + $0x90] sm:$0xff]
    %v194 = vld [vmem:[#allocation7 + $0x98] sm:$0xff]
    %v195 = vld [vmem:[#allocation7 + $0xa0] sm:$0xff]
    %v196 = vld [vmem:[#allocation7 + $0xa8] sm:$0xff]
    %v197 = vld [vmem:[#allocation7 + $0xb0] sm:$0xff]
    %v198 = vld [vmem:[#allocation7 + $0xb8] sm:$0xff]
    %v199 = vld [vmem:[#allocation7 + $0xc0] sm:$0xff]
    %v200 = vld [vmem:[#allocation7 + $0xc8] sm:$0xff]
    %v201 = vld [vmem:[#allocation7 + $0xd0] sm:$0xff]
    %v202 = vld [vmem:[#allocation7 + $0xd8] sm:$0xff]
    %v203 = vld [vmem:[#allocation7 + $0xe0] sm:$0xff]
    %v204 = vld [vmem:[#allocation7 + $0xe8] sm:$0xff]
    %v205 = vld [vmem:[#allocation7 + $0xf0] sm:$0xff]
    %v206 = vld [vmem:[#allocation7 + $0xf8] sm:$0xff]
    %v207 = vld [vmem:[%s4] sm:$0x3]
    %v209 = vlaneseq
    %v210 = vshrl.u32 %v209, 7
    %v211 = vsub.s32 0, %v210
    %v212 = vrot.slane %v207, %v211
    %v213 = vlaneseq
    %v214 = vshrl.u32 %v213, 7
    %v215 = vsub.s32 1, %v214
    %v216 = vrot.slane %v207, %v215
    %219 = vmatprep.subr.mxu0 %v176
    %220 = vmatpush1.msra.mxu0 %v175
    %221 = vmatprep.subr.mxu0 %v178
    %222 = vmatpush1.msra.mxu0 %v177
    %223 = vmatprep.subr.mxu0 %v180
    %224 = vmatpush1.msra.mxu0 %v179
    %225 = vmatprep.subr.mxu0 %v182
    %226 = vmatpush1.msra.mxu0 %v181
    %227 = vmatprep.subr.mxu0 %v184
    %228 = vmatpush1.msra.mxu0 %v183
    %229 = vmatprep.subr.mxu0 %v186
    %230 = vmatpush1.msra.mxu0 %v185
    %231 = vmatprep.subr.mxu0 %v188
    %232 = vmatpush1.msra.mxu0 %v187
    %233 = vmatprep.subr.mxu0 %v190
    %234 = vmatpush1.msra.mxu0 %v189
    %235 = vmatprep.subr.mxu0 %v192
    %236 = vmatpush1.msra.mxu0 %v191
    %237 = vmatprep.subr.mxu0 %v194
    %238 = vmatpush1.msra.mxu0 %v193
    %239 = vmatprep.subr.mxu0 %v196
    %240 = vmatpush1.msra.mxu0 %v195
    %241 = vmatprep.subr.mxu0 %v198
    %242 = vmatpush1.msra.mxu0 %v197
    %243 = vmatprep.subr.mxu0 %v200
    %244 = vmatpush1.msra.mxu0 %v199
    %245 = vmatprep.subr.mxu0 %v202
    %246 = vmatpush1.msra.mxu0 %v201
    %247 = vmatprep.subr.mxu0 %v204
    %248 = vmatpush1.msra.mxu0 %v203
    %249 = vmatprep.subr.mxu0 %v206
    %250 = vmatpush1.msra.mxu0 %v205
    %251 = vmatprep.subr.mxu0 0.0
    %252 = vmatpush1.msra.mxu0 0.0
    %253 = vmatprep.subr.mxu0 0.0
    %254 = vmatpush1.msra.mxu0 0.0
    %255 = vmatprep.subr.mxu0 0.0
    %256 = vmatpush1.msra.mxu0 0.0
    %257 = vmatprep.subr.mxu0 0.0
    %258 = vmatpush1.msra.mxu0 0.0
    %259 = vmatprep.subr.mxu0 0.0
    %260 = vmatpush1.msra.mxu0 0.0
    %261 = vmatprep.subr.mxu0 0.0
    %262 = vmatpush1.msra.mxu0 0.0
    %263 = vmatprep.subr.mxu0 0.0
    %264 = vmatpush1.msra.mxu0 0.0
    %265 = vmatprep.subr.mxu0 0.0
    %266 = vmatpush1.msra.mxu0 0.0
    %267 = vmatprep.subr.mxu0 0.0
    %268 = vmatpush1.msra.mxu0 0.0
    %269 = vmatprep.subr.mxu0 0.0
    %270 = vmatpush1.msra.mxu0 0.0
    %271 = vmatprep.subr.mxu0 0.0
    %272 = vmatpush1.msra.mxu0 0.0
    %273 = vmatprep.subr.mxu0 0.0
    %274 = vmatpush1.msra.mxu0 0.0
    %275 = vmatprep.subr.mxu0 0.0
    %276 = vmatpush1.msra.mxu0 0.0
    %277 = vmatprep.subr.mxu0 0.0
    %278 = vmatpush1.msra.mxu0 0.0
    %279 = vmatprep.subr.mxu0 0.0
    %280 = vmatpush1.msra.mxu0 0.0
    %281 = vmatprep.subr.mxu0 0.0
    %282 = vmatpush1.msra.mxu0 0.0
    %283 = vmatprep.mubr.f32.mxu0 0.0
    %284 = vmatmul.mubr.f32.gmra.mrb[0].mxu0 %v174
    %v285 = vpop.f32.mrb[0].mxu0
    %v286 = vadd.f32 %v212, %v285
    %v287 = vpop.f32.mrb[0].mxu0
    %v288 = vadd.f32 %v216, %v287
    %289 = vdwg.mxu0
    %v290 = vmax.f32 %v286, 0.0
    %v291 = vmax.f32 %v288, 0.0
    %v292 = vld [vmem:[#allocation8] sm:$0xff]
    %v293 = vld [vmem:[#allocation8 + $0x8] sm:$0xff]
    %v294 = vld [vmem:[#allocation8 + $0x10] sm:$0xff]
    %v295 = vld [vmem:[#allocation8 + $0x18] sm:$0xff]
    %v296 = vld [vmem:[#allocation8 + $0x20] sm:$0xff]
    %v297 = vld [vmem:[#allocation8 + $0x28] sm:$0xff]
    %v298 = vld [vmem:[#allocation8 + $0x30] sm:$0xff]
    %v299 = vld [vmem:[#allocation8 + $0x38] sm:$0xff]
    %v300 = vld [vmem:[#allocation8 + $0x40] sm:$0xff]
    %v301 = vld [vmem:[#allocation8 + $0x48] sm:$0xff]
    %v302 = vld [vmem:[#allocation8 + $0x50] sm:$0xff]
    %v303 = vld [vmem:[#allocation8 + $0x58] sm:$0xff]
    %v304 = vld [vmem:[#allocation8 + $0x60] sm:$0xff]
    %v305 = vld [vmem:[#allocation8 + $0x68] sm:$0xff]
    %v306 = vld [vmem:[#allocation8 + $0x70] sm:$0xff]
    %v307 = vld [vmem:[#allocation8 + $0x78] sm:$0xff]
    %v308 = vld [vmem:[#allocation8 + $0x80] sm:$0xff]
    %v309 = vld [vmem:[#allocation8 + $0x88] sm:$0xff]
    %v310 = vld [vmem:[#allocation8 + $0x90] sm:$0xff]
    %v311 = vld [vmem:[#allocation8 + $0x98] sm:$0xff]
    %v312 = vld [vmem:[#allocation8 + $0xa0] sm:$0xff]
    %v313 = vld [vmem:[#allocation8 + $0xa8] sm:$0xff]
    %v314 = vld [vmem:[#allocation8 + $0xb0] sm:$0xff]
    %v315 = vld [vmem:[#allocation8 + $0xb8] sm:$0xff]
    %v316 = vld [vmem:[#allocation8 + $0xc0] sm:$0xff]
    %v317 = vld [vmem:[#allocation8 + $0xc8] sm:$0xff]
    %v318 = vld [vmem:[#allocation8 + $0xd0] sm:$0xff]
    %v319 = vld [vmem:[#allocation8 + $0xd8] sm:$0xff]
    %v320 = vld [vmem:[#allocation8 + $0xe0] sm:$0xff]
    %v321 = vld [vmem:[#allocation8 + $0xe8] sm:$0xff]
    %v322 = vld [vmem:[#allocation8 + $0xf0] sm:$0xff]
    %v323 = vld [vmem:[#allocation8 + $0xf8] sm:$0xff]
    %v324 = vld [vmem:[#allocation8 + $0x100] sm:$0xff]
    %v325 = vld [vmem:[#allocation8 + $0x108] sm:$0xff]
    %v326 = vld [vmem:[#allocation8 + $0x110] sm:$0xff]
    %v327 = vld [vmem:[#allocation8 + $0x118] sm:$0xff]
    %v328 = vld [vmem:[#allocation8 + $0x120] sm:$0xff]
    %v329 = vld [vmem:[#allocation8 + $0x128] sm:$0xff]
    %v330 = vld [vmem:[#allocation8 + $0x130] sm:$0xff]
    %v331 = vld [vmem:[#allocation8 + $0x138] sm:$0xff]
    %v332 = vld [vmem:[#allocation8 + $0x140] sm:$0xff]
    %v333 = vld [vmem:[#allocation8 + $0x148] sm:$0xff]
    %v334 = vld [vmem:[#allocation8 + $0x150] sm:$0xff]
    %v335 = vld [vmem:[#allocation8 + $0x158] sm:$0xff]
    %v336 = vld [vmem:[#allocation8 + $0x160] sm:$0xff]
    %v337 = vld [vmem:[#allocation8 + $0x168] sm:$0xff]
    %v338 = vld [vmem:[#allocation8 + $0x170] sm:$0xff]
    %v339 = vld [vmem:[#allocation8 + $0x178] sm:$0xff]
    %v340 = vld [vmem:[#allocation8 + $0x180] sm:$0xff]
    %v341 = vld [vmem:[#allocation8 + $0x188] sm:$0xff]
    %v342 = vld [vmem:[#allocation8 + $0x190] sm:$0xff]
    %v343 = vld [vmem:[#allocation8 + $0x198] sm:$0xff]
    %v344 = vld [vmem:[#allocation8 + $0x1a0] sm:$0xff]
    %v345 = vld [vmem:[#allocation8 + $0x1a8] sm:$0xff]
    %v346 = vld [vmem:[#allocation8 + $0x1b0] sm:$0xff]
    %v347 = vld [vmem:[#allocation8 + $0x1b8] sm:$0xff]
    %v348 = vld [vmem:[#allocation8 + $0x1c0] sm:$0xff]
    %v349 = vld [vmem:[#allocation8 + $0x1c8] sm:$0xff]
    %v350 = vld [vmem:[#allocation8 + $0x1d0] sm:$0xff]
    %v351 = vld [vmem:[#allocation8 + $0x1d8] sm:$0xff]
    %v352 = vld [vmem:[#allocation8 + $0x1e0] sm:$0xff]
    %v353 = vld [vmem:[#allocation8 + $0x1e8] sm:$0xff]
    %v354 = vld [vmem:[#allocation8 + $0x1f0] sm:$0xff]
    %v355 = vld [vmem:[#allocation8 + $0x1f8] sm:$0xff]
    %v356 = vld [vmem:[%s6] sm:$0x3]
    %v358 = vlaneseq
    %v359 = vshrl.u32 %v358, 7
    %v360 = vsub.s32 0, %v359
    %v361 = vrot.slane %v356, %v360
    %v362 = vlaneseq
    %v363 = vshrl.u32 %v362, 7
    %v364 = vsub.s32 1, %v363
    %v365 = vrot.slane %v356, %v364
    %368 = vmatprep.subr.mxu0 %v293
    %369 = vmatpush1.msra.mxu0 %v292
    %370 = vmatprep.subr.mxu0 %v295
    %371 = vmatpush1.msra.mxu0 %v294
    %372 = vmatprep.subr.mxu0 %v297
    %373 = vmatpush1.msra.mxu0 %v296
    %374 = vmatprep.subr.mxu0 %v299
    %375 = vmatpush1.msra.mxu0 %v298
    %376 = vmatprep.subr.mxu0 %v301
    %377 = vmatpush1.msra.mxu0 %v300
    %378 = vmatprep.subr.mxu0 %v303
    %379 = vmatpush1.msra.mxu0 %v302
    %380 = vmatprep.subr.mxu0 %v305
    %381 = vmatpush1.msra.mxu0 %v304
    %382 = vmatprep.subr.mxu0 %v307
    %383 = vmatpush1.msra.mxu0 %v306
    %384 = vmatprep.subr.mxu0 %v309
    %385 = vmatpush1.msra.mxu0 %v308
    %386 = vmatprep.subr.mxu0 %v311
    %387 = vmatpush1.msra.mxu0 %v310
    %388 = vmatprep.subr.mxu0 %v313
    %389 = vmatpush1.msra.mxu0 %v312
    %390 = vmatprep.subr.mxu0 %v315
    %391 = vmatpush1.msra.mxu0 %v314
    %392 = vmatprep.subr.mxu0 %v317
    %393 = vmatpush1.msra.mxu0 %v316
    %394 = vmatprep.subr.mxu0 %v319
    %395 = vmatpush1.msra.mxu0 %v318
    %396 = vmatprep.subr.mxu0 %v321
    %397 = vmatpush1.msra.mxu0 %v320
    %398 = vmatprep.subr.mxu0 %v323
    %399 = vmatpush1.msra.mxu0 %v322
    %400 = vmatprep.subr.mxu0 %v325
    %401 = vmatpush1.msra.mxu0 %v324
    %402 = vmatprep.subr.mxu0 %v327
    %403 = vmatpush1.msra.mxu0 %v326
    %404 = vmatprep.subr.mxu0 %v329
    %405 = vmatpush1.msra.mxu0 %v328
    %406 = vmatprep.subr.mxu0 %v331
    %407 = vmatpush1.msra.mxu0 %v330
    %408 = vmatprep.subr.mxu0 %v333
    %409 = vmatpush1.msra.mxu0 %v332
    %410 = vmatprep.subr.mxu0 %v335
    %411 = vmatpush1.msra.mxu0 %v334
    %412 = vmatprep.subr.mxu0 %v337
    %413 = vmatpush1.msra.mxu0 %v336
    %414 = vmatprep.subr.mxu0 %v339
    %415 = vmatpush1.msra.mxu0 %v338
    %416 = vmatprep.subr.mxu0 %v341
    %417 = vmatpush1.msra.mxu0 %v340
    %418 = vmatprep.subr.mxu0 %v343
    %419 = vmatpush1.msra.mxu0 %v342
    %420 = vmatprep.subr.mxu0 %v345
    %421 = vmatpush1.msra.mxu0 %v344
    %422 = vmatprep.subr.mxu0 %v347
    %423 = vmatpush1.msra.mxu0 %v346
    %424 = vmatprep.subr.mxu0 %v349
    %425 = vmatpush1.msra.mxu0 %v348
    %426 = vmatprep.subr.mxu0 %v351
    %427 = vmatpush1.msra.mxu0 %v350
    %428 = vmatprep.subr.mxu0 %v353
    %429 = vmatpush1.msra.mxu0 %v352
    %430 = vmatprep.subr.mxu0 %v355
    %431 = vmatpush1.msra.mxu0 %v354
    %432 = vmatprep.mubr.f32.mxu0 %v291
    %433 = vmatmul.mubr.f32.gmra.mrb[0].mxu0 %v290
    %v434 = vpop.f32.mrb[0].mxu0
    %v435 = vadd.f32 %v361, %v434
    %v436 = vpop.f32.mrb[0].mxu0
    %v437 = vadd.f32 %v365, %v436
    %438 = vdwg.mxu0
    %v441 = vcombine.low %v435, %v437
    %443 = vst [vmem:[#allocation10] sm:$0xff] %v441
    // Predicated region
    $region46: #{tpu_custom_call.1} parent=1 // pred_check
      _
    $region47: #{tpu_custom_call.1} parent=1 // pred_check_branch
      %445 = sbr.rel (0) target = $region49
    $region48: #{tpu_custom_call.1} parent=1 // pred_region
      %s447 = ssub.s32 128, 128
      %448 = vsyncadd [#allocation4], %s447
      %s450 = sshll.u32 [#allocation10], 4
      %s451 = int_to_ptr.vmem [resolvable:$true] %s450
      %453 = dma.vmem_to_hbm [thread:$0]  %s451, 128, %s7, [#allocation4]
    $region49: #{tpu_custom_call.1} parent=1 // pred_fallthru
      _
    // Predicated region
    $region50: #{tpu_custom_call.1} parent=1 // pred_check
      _
    $region51: #{tpu_custom_call.1} parent=1 // pred_check_branch
      %455 = sbr.rel (0) target = $region53
    $region52: #{tpu_custom_call.1} parent=1 // pred_region
      %456 = dma.done [#allocation4], 128
    $region53: #{tpu_custom_call.1} parent=1 // pred_fallthru
      _
    %457 = vsyncpa [#allocation3], 1
    %458 = vsyncpa [#allocation6], 1
    %459 = vsyncpa [#allocation9], 1
    %460 = vsyncpa [#allocation4], 1

// kernel: tpu_custom_call.1
$region0: #{tpu_custom_call.1}
  #allocation0 [shape = 'u32[]', space=smem, size = 0x4, offset = 0x4, fixed_abs, tag = 'smem constant byte address 0x4 - core index']
  #allocation1 [shape = 'u32[144,128]{1,0:T(1,128)}', space=vmem, size = 0x12000, scoped, tag = 'internal scratch']
  %s0 = inlined_call_operand.hbm [shape: f32[4,128], index: 0, kind: input, shape index: {}]
  %s1 = inlined_call_operand.hbm [shape: f32[128,128], index: 1, kind: input, shape index: {}]
  %s2 = inlined_call_operand.vmem [shape: f32[1,128], index: 2, kind: input, shape index: {}]
  %s3 = inlined_call_operand.hbm [shape: f32[128,256], index: 3, kind: input, shape index: {}]
  %s4 = inlined_call_operand.vmem [shape: f32[1,256], index: 4, kind: input, shape index: {}]
  %s5 = inlined_call_operand.hbm [shape: f32[256,256], index: 5, kind: input, shape index: {}]
  %s6 = inlined_call_operand.vmem [shape: f32[1,256], index: 6, kind: input, shape index: {}]
  %s7 = inlined_call_operand.hbm [shape: f32[4,256], index: 7, kind: output, shape index: {}]
  %s8 = sld [smem:[#allocation0]]
  $region54: #{tpu_custom_call.1} parent=0
    _
  %s10 = ssub.s32 1, %s8
  %s11 = scalar_select 0, %s10, %s8
  $region1: #{tpu_custom_call.1} parent=0
    #allocation2 [shape = 'u8[2048]{0}', space=vmem, size = 0x800, scoped, tag = 'input window, operand 0, single buffered']
    #allocation3 [shape = 's32[1]{0}', space=sflag, size = 0x4, scoped, tag = 'scoped memory for tpu_custom_call.1']
    #allocation4 [shape = 's32[1]{0}', space=sflag, size = 0x4, scoped, tag = 'scoped memory for tpu_custom_call.1']
    #allocation5 [shape = 'u8[65536]{0}', space=vmem, size = 0x10000, scoped, tag = 'input window, operand 1, single buffered']
    #allocation6 [shape = 's32[1]{0}', space=sflag, size = 0x4, scoped, tag = 'scoped memory for tpu_custom_call.1']
    #allocation7 [shape = 'u8[131072]{0}', space=vmem, size = 0x20000, scoped, tag = 'input window, operand 3, single buffered']
    #allocation8 [shape = 'u8[262144]{0}', space=vmem, size = 0x40000, scoped, tag = 'input window, operand 5, single buffered']
    #allocation9 [shape = 's32[1]{0}', space=sflag, size = 0x4, scoped, tag = 'scoped memory for tpu_custom_call.1']
    #allocation10 [shape = 'u8[4096]{0}', space=vmem, size = 0x1000, scoped, tag = 'output window, operand 0, single buffered']
    %12 = vsyncpa [#allocation3], 0
    %13 = vsyncpa [#allocation6], 0
    %14 = vsyncpa [#allocation9], 0
    %15 = vsyncpa [#allocation4], 0
    // Predicated region
    $region2: #{tpu_custom_call.1} parent=1 // pred_check
      _
    $region3: #{tpu_custom_call.1} parent=1 // pred_check_branch
      %17 = sbr.rel (0) target = $region5
    $region4: #{tpu_custom_call.1} parent=1 // pred_region
      %s19 = ssub.s32 64, 64
      %20 = vsyncadd [#allocation3], %s19
      %s22 = sshll.u32 [#allocation2], 4
      %s23 = int_to_ptr.vmem [resolvable:$true] %s22
      %25 = dma.hbm_to_vmem [thread:$0]  %s0, 64, %s23, [#allocation3]
    $region5: #{tpu_custom_call.1} parent=1 // pred_fallthru
      _
    // Predicated region
    $region6: #{tpu_custom_call.1} parent=1 // pred_check
      _
    $region7: #{tpu_custom_call.1} parent=1 // pred_check_branch
      %27 = sbr.rel (0) target = $region9
    $region8: #{tpu_custom_call.1} parent=1 // pred_region
      %s29 = ssub.s32 2048, 2048
      %30 = vsyncadd [#allocation6], %s29
      %s31 = sshll.u32 [#allocation5], 4
      %s32 = int_to_ptr.vmem [resolvable:$true] %s31
      %37 = dma.hbm_to_vmem [thread:$0]  %s1, 2048, %s32, [#allocation6], 128, 128, 8
    $region9: #{tpu_custom_call.1} parent=1 // pred_fallthru
      _
    // Predicated region
    $region10: #{tpu_custom_call.1} parent=1 // pred_check
      _
    $region11: #{tpu_custom_call.1} parent=1 // pred_check_branch
      %39 = sbr.rel (0) target = $region13
    $region12: #{tpu_custom_call.1} parent=1 // pred_region
      _
    $region13: #{tpu_custom_call.1} parent=1 // pred_fallthru
      _
    // Predicated region
    $region14: #{tpu_custom_call.1} parent=1 // pred_check
      _
    $region15: #{tpu_custom_call.1} parent=1 // pred_check_branch
      %41 = sbr.rel (0) target = $region17
    $region16: #{tpu_custom_call.1} parent=1 // pred_region
      %s43 = ssub.s32 4096, 4096
      %44 = vsyncadd [#allocation6], %s43
      %s45 = sshll.u32 [#allocation7], 4
      %s46 = int_to_ptr.vmem [resolvable:$true] %s45
      %51 = dma.hbm_to_vmem [thread:$0]  %s3, 4096, %s46, [#allocation6], 256, 256, 16
    $region17: #{tpu_custom_call.1} parent=1 // pred_fallthru
      _
    // Predicated region
    $region18: #{tpu_custom_call.1} parent=1 // pred_check
      _
    $region19: #{tpu_custom_call.1} parent=1 // pred_check_branch
      %53 = sbr.rel (0) target = $region21
    $region20: #{tpu_custom_call.1} parent=1 // pred_region
      _
    $region21: #{tpu_custom_call.1} parent=1 // pred_fallthru
      _
    // Predicated region
    $region22: #{tpu_custom_call.1} parent=1 // pred_check
      _
    $region23: #{tpu_custom_call.1} parent=1 // pred_check_branch
      %55 = sbr.rel (0) target = $region25
    $region24: #{tpu_custom_call.1} parent=1 // pred_region
      %s57 = ssub.s32 8192, 8192
      %58 = vsyncadd [#allocation9], %s57
      %s59 = sshll.u32 [#allocation8], 4
      %s60 = int_to_ptr.vmem [resolvable:$true] %s59
      %65 = dma.hbm_to_vmem [thread:$0]  %s5, 8192, %s60, [#allocation9], 256, 256, 16
    $region25: #{tpu_custom_call.1} parent=1 // pred_fallthru
      _
    // Predicated region
    $region26: #{tpu_custom_call.1} parent=1 // pred_check
      _
    $region27: #{tpu_custom_call.1} parent=1 // pred_check_branch
      %67 = sbr.rel (0) target = $region29
    $region28: #{tpu_custom_call.1} parent=1 // pred_region
      _
    $region29: #{tpu_custom_call.1} parent=1 // pred_fallthru
      _
    // Predicated region
    $region30: #{tpu_custom_call.1} parent=1 // pred_check
      _
    $region31: #{tpu_custom_call.1} parent=1 // pred_check_branch
      %69 = sbr.rel (0) target = $region33
    $region32: #{tpu_custom_call.1} parent=1 // pred_region
      %70 = dma.done [#allocation3], 64
    $region33: #{tpu_custom_call.1} parent=1 // pred_fallthru
      _
    // Predicated region
    $region34: #{tpu_custom_call.1} parent=1 // pred_check
      _
    $region35: #{tpu_custom_call.1} parent=1 // pred_check_branch
      %72 = sbr.rel (0) target = $region37
    $region36: #{tpu_custom_call.1} parent=1 // pred_region
      %73 = dma.done [#allocation6], 2048
    $region37: #{tpu_custom_call.1} parent=1 // pred_fallthru
      _
    // Predicated region
    $region38: #{tpu_custom_call.1} parent=1 // pred_check
      _
    $region39: #{tpu_custom_call.1} parent=1 // pred_check_branch
      %75 = sbr.rel (0) target = $region41
    $region40: #{tpu_custom_call.1} parent=1 // pred_region
      %76 = dma.done [#allocation6], 4096
    $region41: #{tpu_custom_call.1} parent=1 // pred_fallthru
      _
    // Predicated region
    $region42: #{tpu_custom_call.1} parent=1 // pred_check
      _
    $region43: #{tpu_custom_call.1} parent=1 // pred_check_branch
      %78 = sbr.rel (0) target = $region45
    $region44: #{tpu_custom_call.1} parent=1 // pred_region
      %79 = dma.done [#allocation9], 8192
    $region45: #{tpu_custom_call.1} parent=1 // pred_fallthru
      _
    %v80 = vld [vmem:[#allocation2] sm:$0xf]
    %v81 = vld [vmem:[#allocation5] sm:$0xff]
    %v82 = vld [vmem:[#allocation5 + $0x8] sm:$0xff]
    %v83 = vld [vmem:[#allocation5 + $0x10] sm:$0xff]
    %v84 = vld [vmem:[#allocation5 + $0x18] sm:$0xff]
    %v85 = vld [vmem:[#allocation5 + $0x20] sm:$0xff]
    %v86 = vld [vmem:[#allocation5 + $0x28] sm:$0xff]
    %v87 = vld [vmem:[#allocation5 + $0x30] sm:$0xff]
    %v88 = vld [vmem:[#allocation5 + $0x38] sm:$0xff]
    %v89 = vld [vmem:[#allocation5 + $0x40] sm:$0xff]
    %v90 = vld [vmem:[#allocation5 + $0x48] sm:$0xff]
    %v91 = vld [vmem:[#allocation5 + $0x50] sm:$0xff]
    %v92 = vld [vmem:[#allocation5 + $0x58] sm:$0xff]
    %v93 = vld [vmem:[#allocation5 + $0x60] sm:$0xff]
    %v94 = vld [vmem:[#allocation5 + $0x68] sm:$0xff]
    %v95 = vld [vmem:[#allocation5 + $0x70] sm:$0xff]
    %v96 = vld [vmem:[#allocation5 + $0x78] sm:$0xff]
    %v97 = vld [vmem:[%s2] sm:$0x1]
    %v99 = vlaneseq
    %v100 = vshrl.u32 %v99, 7
    %v101 = vsub.s32 0, %v100
    %v102 = vrot.slane %v97, %v101
    %104 = vmatprep.subr.mxu0 0.0
    %105 = vmatpush1.msra.mxu0 %v81
    %106 = vmatprep.subr.mxu0 0.0
    %107 = vmatpush1.msra.mxu0 %v82
    %108 = vmatprep.subr.mxu0 0.0
    %109 = vmatpush1.msra.mxu0 %v83
    %110 = vmatprep.subr.mxu0 0.0
    %111 = vmatpush1.msra.mxu0 %v84
    %112 = vmatprep.subr.mxu0 0.0
    %113 = vmatpush1.msra.mxu0 %v85
    %114 = vmatprep.subr.mxu0 0.0
    %115 = vmatpush1.msra.mxu0 %v86
    %116 = vmatprep.subr.mxu0 0.0
    %117 = vmatpush1.msra.mxu0 %v87
    %118 = vmatprep.subr.mxu0 0.0
    %119 = vmatpush1.msra.mxu0 %v88
    %120 = vmatprep.subr.mxu0 0.0
    %121 = vmatpush1.msra.mxu0 %v89
    %122 = vmatprep.subr.mxu0 0.0
    %123 = vmatpush1.msra.mxu0 %v90
    %124 = vmatprep.subr.mxu0 0.0
    %125 = vmatpush1.msra.mxu0 %v91
    %126 = vmatprep.subr.mxu0 0.0
    %127 = vmatpush1.msra.mxu0 %v92
    %128 = vmatprep.subr.mxu0 0.0
    %129 = vmatpush1.msra.mxu0 %v93
    %130 = vmatprep.subr.mxu0 0.0
    %131 = vmatpush1.msra.mxu0 %v94
    %132 = vmatprep.subr.mxu0 0.0
    %133 = vmatpush1.msra.mxu0 %v95
    %134 = vmatprep.subr.mxu0 0.0
    %135 = vmatpush1.msra.mxu0 %v96
    %136 = vmatprep.subr.mxu0 0.0
    %137 = vmatpush1.msra.mxu0 0.0
    %138 = vmatprep.subr.mxu0 0.0
    %139 = vmatpush1.msra.mxu0 0.0
    %140 = vmatprep.subr.mxu0 0.0
    %141 = vmatpush1.msra.mxu0 0.0
    %142 = vmatprep.subr.mxu0 0.0
    %143 = vmatpush1.msra.mxu0 0.0
    %144 = vmatprep.subr.mxu0 0.0
    %145 = vmatpush1.msra.mxu0 0.0
    %146 = vmatprep.subr.mxu0 0.0
    %147 = vmatpush1.msra.mxu0 0.0
    %148 = vmatprep.subr.mxu0 0.0
    %149 = vmatpush1.msra.mxu0 0.0
    %150 = vmatprep.subr.mxu0 0.0
    %151 = vmatpush1.msra.mxu0 0.0
    %152 = vmatprep.subr.mxu0 0.0
    %153 = vmatpush1.msra.mxu0 0.0
    %154 = vmatprep.subr.mxu0 0.0
    %155 = vmatpush1.msra.mxu0 0.0
    %156 = vmatprep.subr.mxu0 0.0
    %157 = vmatpush1.msra.mxu0 0.0
    %158 = vmatprep.subr.mxu0 0.0
    %159 = vmatpush1.msra.mxu0 0.0
    %160 = vmatprep.subr.mxu0 0.0
    %161 = vmatpush1.msra.mxu0 0.0
    %162 = vmatprep.subr.mxu0 0.0
    %163 = vmatpush1.msra.mxu0 0.0
    %164 = vmatprep.subr.mxu0 0.0
    %165 = vmatpush1.msra.mxu0 0.0
    %166 = vmatprep.subr.mxu0 0.0
    %167 = vmatpush1.msra.mxu0 0.0
    %168 = vmatprep.mubr.f32.mxu0 0.0
    %169 = vmatmul.mubr.f32.gmra.mrb[0].mxu0 %v80
    %v170 = vpop.f32.mrb[0].mxu0
    %v171 = vadd.f32 %v102, %v170
    %v172 = vpop.f32.mrb[0].mxu0
    %173 = vdwg.mxu0
    %v174 = vmax.f32 %v171, 0.0
    %v175 = vld [vmem:[#allocation7] sm:$0xff]
    %v176 = vld [vmem:[#allocation7 + $0x8] sm:$0xff]
    %v177 = vld [vmem:[#allocation7 + $0x10] sm:$0xff]
    %v178 = vld [vmem:[#allocation7 + $0x18] sm:$0xff]
    %v179 = vld [vmem:[#allocation7 + $0x20] sm:$0xff]
    %v180 = vld [vmem:[#allocation7 + $0x28] sm:$0xff]
    %v181 = vld [vmem:[#allocation7 + $0x30] sm:$0xff]
    %v182 = vld [vmem:[#allocation7 + $0x38] sm:$0xff]
    %v183 = vld [vmem:[#allocation7 + $0x40] sm:$0xff]
    %v184 = vld [vmem:[#allocation7 + $0x48] sm:$0xff]
    %v185 = vld [vmem:[#allocation7 + $0x50] sm:$0xff]
    %v186 = vld [vmem:[#allocation7 + $0x58] sm:$0xff]
    %v187 = vld [vmem:[#allocation7 + $0x60] sm:$0xff]
    %v188 = vld [vmem:[#allocation7 + $0x68] sm:$0xff]
    %v189 = vld [vmem:[#allocation7 + $0x70] sm:$0xff]
    %v190 = vld [vmem:[#allocation7 + $0x78] sm:$0xff]
    %v191 = vld [vmem:[#allocation7 + $0x80] sm:$0xff]
    %v192 = vld [vmem:[#allocation7 + $0x88] sm:$0xff]
    %v193 = vld [vmem:[#allocation7 + $0x90] sm:$0xff]
    %v194 = vld [vmem:[#allocation7 + $0x98] sm:$0xff]
    %v195 = vld [vmem:[#allocation7 + $0xa0] sm:$0xff]
    %v196 = vld [vmem:[#allocation7 + $0xa8] sm:$0xff]
    %v197 = vld [vmem:[#allocation7 + $0xb0] sm:$0xff]
    %v198 = vld [vmem:[#allocation7 + $0xb8] sm:$0xff]
    %v199 = vld [vmem:[#allocation7 + $0xc0] sm:$0xff]
    %v200 = vld [vmem:[#allocation7 + $0xc8] sm:$0xff]
    %v201 = vld [vmem:[#allocation7 + $0xd0] sm:$0xff]
    %v202 = vld [vmem:[#allocation7 + $0xd8] sm:$0xff]
    %v203 = vld [vmem:[#allocation7 + $0xe0] sm:$0xff]
    %v204 = vld [vmem:[#allocation7 + $0xe8] sm:$0xff]
    %v205 = vld [vmem:[#allocation7 + $0xf0] sm:$0xff]
    %v206 = vld [vmem:[#allocation7 + $0xf8] sm:$0xff]
    %v207 = vld [vmem:[%s4] sm:$0x3]
    %v209 = vlaneseq
    %v210 = vshrl.u32 %v209, 7
    %v211 = vsub.s32 0, %v210
    %v212 = vrot.slane %v207, %v211
    %v213 = vlaneseq
    %v214 = vshrl.u32 %v213, 7
    %v215 = vsub.s32 1, %v214
    %v216 = vrot.slane %v207, %v215
    %219 = vmatprep.subr.mxu0 %v176
    %220 = vmatpush1.msra.mxu0 %v175
    %221 = vmatprep.subr.mxu0 %v178
    %222 = vmatpush1.msra.mxu0 %v177
    %223 = vmatprep.subr.mxu0 %v180
    %224 = vmatpush1.msra.mxu0 %v179
    %225 = vmatprep.subr.mxu0 %v182
    %226 = vmatpush1.msra.mxu0 %v181
    %227 = vmatprep.subr.mxu0 %v184
    %228 = vmatpush1.msra.mxu0 %v183
    %229 = vmatprep.subr.mxu0 %v186
    %230 = vmatpush1.msra.mxu0 %v185
    %231 = vmatprep.subr.mxu0 %v188
    %232 = vmatpush1.msra.mxu0 %v187
    %233 = vmatprep.subr.mxu0 %v190
    %234 = vmatpush1.msra.mxu0 %v189
    %235 = vmatprep.subr.mxu0 %v192
    %236 = vmatpush1.msra.mxu0 %v191
    %237 = vmatprep.subr.mxu0 %v194
    %238 = vmatpush1.msra.mxu0 %v193
    %239 = vmatprep.subr.mxu0 %v196
    %240 = vmatpush1.msra.mxu0 %v195
    %241 = vmatprep.subr.mxu0 %v198
    %242 = vmatpush1.msra.mxu0 %v197
    %243 = vmatprep.subr.mxu0 %v200
    %244 = vmatpush1.msra.mxu0 %v199
    %245 = vmatprep.subr.mxu0 %v202
    %246 = vmatpush1.msra.mxu0 %v201
    %247 = vmatprep.subr.mxu0 %v204
    %248 = vmatpush1.msra.mxu0 %v203
    %249 = vmatprep.subr.mxu0 %v206
    %250 = vmatpush1.msra.mxu0 %v205
    %251 = vmatprep.subr.mxu0 0.0
    %252 = vmatpush1.msra.mxu0 0.0
    %253 = vmatprep.subr.mxu0 0.0
    %254 = vmatpush1.msra.mxu0 0.0
    %255 = vmatprep.subr.mxu0 0.0
    %256 = vmatpush1.msra.mxu0 0.0
    %257 = vmatprep.subr.mxu0 0.0
    %258 = vmatpush1.msra.mxu0 0.0
    %259 = vmatprep.subr.mxu0 0.0
    %260 = vmatpush1.msra.mxu0 0.0
    %261 = vmatprep.subr.mxu0 0.0
    %262 = vmatpush1.msra.mxu0 0.0
    %263 = vmatprep.subr.mxu0 0.0
    %264 = vmatpush1.msra.mxu0 0.0
    %265 = vmatprep.subr.mxu0 0.0
    %266 = vmatpush1.msra.mxu0 0.0
    %267 = vmatprep.subr.mxu0 0.0
    %268 = vmatpush1.msra.mxu0 0.0
    %269 = vmatprep.subr.mxu0 0.0
    %270 = vmatpush1.msra.mxu0 0.0
    %271 = vmatprep.subr.mxu0 0.0
    %272 = vmatpush1.msra.mxu0 0.0
    %273 = vmatprep.subr.mxu0 0.0
    %274 = vmatpush1.msra.mxu0 0.0
    %275 = vmatprep.subr.mxu0 0.0
    %276 = vmatpush1.msra.mxu0 0.0
    %277 = vmatprep.subr.mxu0 0.0
    %278 = vmatpush1.msra.mxu0 0.0
    %279 = vmatprep.subr.mxu0 0.0
    %280 = vmatpush1.msra.mxu0 0.0
    %281 = vmatprep.subr.mxu0 0.0
    %282 = vmatpush1.msra.mxu0 0.0
    %283 = vmatprep.mubr.f32.mxu0 0.0
    %284 = vmatmul.mubr.f32.gmra.mrb[0].mxu0 %v174
    %v285 = vpop.f32.mrb[0].mxu0
    %v286 = vadd.f32 %v212, %v285
    %v287 = vpop.f32.mrb[0].mxu0
    %v288 = vadd.f32 %v216, %v287
    %289 = vdwg.mxu0
    %v290 = vmax.f32 %v286, 0.0
    %v291 = vmax.f32 %v288, 0.0
    %v292 = vld [vmem:[#allocation8] sm:$0xff]
    %v293 = vld [vmem:[#allocation8 + $0x8] sm:$0xff]
    %v294 = vld [vmem:[#allocation8 + $0x10] sm:$0xff]
    %v295 = vld [vmem:[#allocation8 + $0x18] sm:$0xff]
    %v296 = vld [vmem:[#allocation8 + $0x20] sm:$0xff]
    %v297 = vld [vmem:[#allocation8 + $0x28] sm:$0xff]
    %v298 = vld [vmem:[#allocation8 + $0x30] sm:$0xff]
    %v299 = vld [vmem:[#allocation8 + $0x38] sm:$0xff]
    %v300 = vld [vmem:[#allocation8 + $0x40] sm:$0xff]
    %v301 = vld [vmem:[#allocation8 + $0x48] sm:$0xff]
    %v302 = vld [vmem:[#allocation8 + $0x50] sm:$0xff]
    %v303 = vld [vmem:[#allocation8 + $0x58] sm:$0xff]
    %v304 = vld [vmem:[#allocation8 + $0x60] sm:$0xff]
    %v305 = vld [vmem:[#allocation8 + $0x68] sm:$0xff]
    %v306 = vld [vmem:[#allocation8 + $0x70] sm:$0xff]
    %v307 = vld [vmem:[#allocation8 + $0x78] sm:$0xff]
    %v308 = vld [vmem:[#allocation8 + $0x80] sm:$0xff]
    %v309 = vld [vmem:[#allocation8 + $0x88] sm:$0xff]
    %v310 = vld [vmem:[#allocation8 + $0x90] sm:$0xff]
    %v311 = vld [vmem:[#allocation8 + $0x98] sm:$0xff]
    %v312 = vld [vmem:[#allocation8 + $0xa0] sm:$0xff]
    %v313 = vld [vmem:[#allocation8 + $0xa8] sm:$0xff]
    %v314 = vld [vmem:[#allocation8 + $0xb0] sm:$0xff]
    %v315 = vld [vmem:[#allocation8 + $0xb8] sm:$0xff]
    %v316 = vld [vmem:[#allocation8 + $0xc0] sm:$0xff]
    %v317 = vld [vmem:[#allocation8 + $0xc8] sm:$0xff]
    %v318 = vld [vmem:[#allocation8 + $0xd0] sm:$0xff]
    %v319 = vld [vmem:[#allocation8 + $0xd8] sm:$0xff]
    %v320 = vld [vmem:[#allocation8 + $0xe0] sm:$0xff]
    %v321 = vld [vmem:[#allocation8 + $0xe8] sm:$0xff]
    %v322 = vld [vmem:[#allocation8 + $0xf0] sm:$0xff]
    %v323 = vld [vmem:[#allocation8 + $0xf8] sm:$0xff]
    %v324 = vld [vmem:[#allocation8 + $0x100] sm:$0xff]
    %v325 = vld [vmem:[#allocation8 + $0x108] sm:$0xff]
    %v326 = vld [vmem:[#allocation8 + $0x110] sm:$0xff]
    %v327 = vld [vmem:[#allocation8 + $0x118] sm:$0xff]
    %v328 = vld [vmem:[#allocation8 + $0x120] sm:$0xff]
    %v329 = vld [vmem:[#allocation8 + $0x128] sm:$0xff]
    %v330 = vld [vmem:[#allocation8 + $0x130] sm:$0xff]
    %v331 = vld [vmem:[#allocation8 + $0x138] sm:$0xff]
    %v332 = vld [vmem:[#allocation8 + $0x140] sm:$0xff]
    %v333 = vld [vmem:[#allocation8 + $0x148] sm:$0xff]
    %v334 = vld [vmem:[#allocation8 + $0x150] sm:$0xff]
    %v335 = vld [vmem:[#allocation8 + $0x158] sm:$0xff]
    %v336 = vld [vmem:[#allocation8 + $0x160] sm:$0xff]
    %v337 = vld [vmem:[#allocation8 + $0x168] sm:$0xff]
    %v338 = vld [vmem:[#allocation8 + $0x170] sm:$0xff]
    %v339 = vld [vmem:[#allocation8 + $0x178] sm:$0xff]
    %v340 = vld [vmem:[#allocation8 + $0x180] sm:$0xff]
    %v341 = vld [vmem:[#allocation8 + $0x188] sm:$0xff]
    %v342 = vld [vmem:[#allocation8 + $0x190] sm:$0xff]
    %v343 = vld [vmem:[#allocation8 + $0x198] sm:$0xff]
    %v344 = vld [vmem:[#allocation8 + $0x1a0] sm:$0xff]
    %v345 = vld [vmem:[#allocation8 + $0x1a8] sm:$0xff]
    %v346 = vld [vmem:[#allocation8 + $0x1b0] sm:$0xff]
    %v347 = vld [vmem:[#allocation8 + $0x1b8] sm:$0xff]
    %v348 = vld [vmem:[#allocation8 + $0x1c0] sm:$0xff]
    %v349 = vld [vmem:[#allocation8 + $0x1c8] sm:$0xff]
    %v350 = vld [vmem:[#allocation8 + $0x1d0] sm:$0xff]
    %v351 = vld [vmem:[#allocation8 + $0x1d8] sm:$0xff]
    %v352 = vld [vmem:[#allocation8 + $0x1e0] sm:$0xff]
    %v353 = vld [vmem:[#allocation8 + $0x1e8] sm:$0xff]
    %v354 = vld [vmem:[#allocation8 + $0x1f0] sm:$0xff]
    %v355 = vld [vmem:[#allocation8 + $0x1f8] sm:$0xff]
    %v356 = vld [vmem:[%s6] sm:$0x3]
    %v358 = vlaneseq
    %v359 = vshrl.u32 %v358, 7
    %v360 = vsub.s32 0, %v359
    %v361 = vrot.slane %v356, %v360
    %v362 = vlaneseq
    %v363 = vshrl.u32 %v362, 7
    %v364 = vsub.s32 1, %v363
    %v365 = vrot.slane %v356, %v364
    %368 = vmatprep.subr.mxu0 %v293
    %369 = vmatpush1.msra.mxu0 %v292
    %370 = vmatprep.subr.mxu0 %v295
    %371 = vmatpush1.msra.mxu0 %v294
    %372 = vmatprep.subr.mxu0 %v297
    %373 = vmatpush1.msra.mxu0 %v296
    %374 = vmatprep.subr.mxu0 %v299
    %375 = vmatpush1.msra.mxu0 %v298
    %376 = vmatprep.subr.mxu0 %v301
    %377 = vmatpush1.msra.mxu0 %v300
    %378 = vmatprep.subr.mxu0 %v303
    %379 = vmatpush1.msra.mxu0 %v302
    %380 = vmatprep.subr.mxu0 %v305
    %381 = vmatpush1.msra.mxu0 %v304
    %382 = vmatprep.subr.mxu0 %v307
    %383 = vmatpush1.msra.mxu0 %v306
    %384 = vmatprep.subr.mxu0 %v309
    %385 = vmatpush1.msra.mxu0 %v308
    %386 = vmatprep.subr.mxu0 %v311
    %387 = vmatpush1.msra.mxu0 %v310
    %388 = vmatprep.subr.mxu0 %v313
    %389 = vmatpush1.msra.mxu0 %v312
    %390 = vmatprep.subr.mxu0 %v315
    %391 = vmatpush1.msra.mxu0 %v314
    %392 = vmatprep.subr.mxu0 %v317
    %393 = vmatpush1.msra.mxu0 %v316
    %394 = vmatprep.subr.mxu0 %v319
    %395 = vmatpush1.msra.mxu0 %v318
    %396 = vmatprep.subr.mxu0 %v321
    %397 = vmatpush1.msra.mxu0 %v320
    %398 = vmatprep.subr.mxu0 %v323
    %399 = vmatpush1.msra.mxu0 %v322
    %400 = vmatprep.subr.mxu0 %v325
    %401 = vmatpush1.msra.mxu0 %v324
    %402 = vmatprep.subr.mxu0 %v327
    %403 = vmatpush1.msra.mxu0 %v326
    %404 = vmatprep.subr.mxu0 %v329
    %405 = vmatpush1.msra.mxu0 %v328
    %406 = vmatprep.subr.mxu0 %v331
    %407 = vmatpush1.msra.mxu0 %v330
    %408 = vmatprep.subr.mxu0 %v333
    %409 = vmatpush1.msra.mxu0 %v332
    %410 = vmatprep.subr.mxu0 %v335
    %411 = vmatpush1.msra.mxu0 %v334
    %412 = vmatprep.subr.mxu0 %v337
    %413 = vmatpush1.msra.mxu0 %v336
    %414 = vmatprep.subr.mxu0 %v339
    %415 = vmatpush1.msra.mxu0 %v338
    %416 = vmatprep.subr.mxu0 %v341
    %417 = vmatpush1.msra.mxu0 %v340
    %418 = vmatprep.subr.mxu0 %v343
    %419 = vmatpush1.msra.mxu0 %v342
    %420 = vmatprep.subr.mxu0 %v345
    %421 = vmatpush1.msra.mxu0 %v344
    %422 = vmatprep.subr.mxu0 %v347
    %423 = vmatpush1.msra.mxu0 %v346
    %424 = vmatprep.subr.mxu0 %v349
    %425 = vmatpush1.msra.mxu0 %v348
    %426 = vmatprep.subr.mxu0 %v351
    %427 = vmatpush1.msra.mxu0 %v350
    %428 = vmatprep.subr.mxu0 %v353
    %429 = vmatpush1.msra.mxu0 %v352
    %430 = vmatprep.subr.mxu0 %v355
    %431 = vmatpush1.msra.mxu0 %v354
    %432 = vmatprep.mubr.f32.mxu0 %v291
    %433 = vmatmul.mubr.f32.gmra.mrb[0].mxu0 %v290
    %v434 = vpop.f32.mrb[0].mxu0
    %v435 = vadd.f32 %v361, %v434
    %v436 = vpop.f32.mrb[0].mxu0
    %v437 = vadd.f32 %v365, %v436
    %438 = vdwg.mxu0
    %v441 = vcombine.low %v435, %v437
    %443 = vst [vmem:[#allocation10] sm:$0xff] %v441
    // Predicated region
    $region46: #{tpu_custom_call.1} parent=1 // pred_check
      _
    $region47: #{tpu_custom_call.1} parent=1 // pred_check_branch
      %445 = sbr.rel (0) target = $region49
    $region48: #{tpu_custom_call.1} parent=1 // pred_region
      %s447 = ssub.s32 128, 128
      %448 = vsyncadd [#allocation4], %s447
      %s450 = sshll.u32 [#allocation10], 4
      %s451 = int_to_ptr.vmem [resolvable:$true] %s450
      %453 = dma.vmem_to_hbm [thread:$0]  %s451, 128, %s7, [#allocation4]
    $region49: #{tpu_custom_call.1} parent=1 // pred_fallthru
      _
    // Predicated region
    $region50: #{tpu_custom_call.1} parent=1 // pred_check
      _
    $region51: #{tpu_custom_call.1} parent=1 // pred_check_branch
      %455 = sbr.rel (0) target = $region53
    $region52: #{tpu_custom_call.1} parent=1 // pred_region
      %456 = dma.done [#allocation4], 128
    $region53: #{tpu_custom_call.1} parent=1 // pred_fallthru
      _
    %457 = vsyncpa [#allocation3], 1
    %458 = vsyncpa [#allocation6], 1
    %459 = vsyncpa [#allocation9], 1
    %460 = vsyncpa [#allocation4], 1

</llo_original>
